<compile_context>
chip_gen: v7x
topology: tpu7x:2x2x1
jax: 0.10.0
libtpu: 0.0.40
codegen_flags: <defaults>
</compile_context>

<pallas_src>
import functools

import jax
import jax.numpy as jnp
from jax.experimental import pallas as pl
from jax.experimental.pallas import tpu as pltpu


_DEFAULT_VMEM_CAPACITY = 64 * 1024 * 1024   # conservative fallback (v7x per-TC)
_FUSED_VMEM_FRACTION = 0.72                 # headroom for Mosaic internal scratch
_FUSED_UNROLL_MAX = 16                      # static-unroll cap in the fused kernel


def _vmem_budget_bytes():
    """Generation-aware usable-VMEM estimate (v5e/v6e: 128 MiB, v7x: 64 MiB)."""
    try:
        info = pltpu.get_tpu_info()
        cap = int(getattr(info, "vmem_capacity_bytes", _DEFAULT_VMEM_CAPACITY))
    except Exception:
        cap = _DEFAULT_VMEM_CAPACITY
    return int(cap * _FUSED_VMEM_FRACTION)


# ---------------------------------------------------------------------------
# Fused path: whole fragment chain in ONE invocation (no grid, no per-step DMA).
# ---------------------------------------------------------------------------
def _fused_kernel(x_ref, w1_ref, b1_ref, w2_ref, b2_ref, o_ref, *, num_fragments):
    def one_fragment(f, cur):
        h = jnp.dot(cur.astype(w1_ref.dtype), w1_ref[f],
                    preferred_element_type=jnp.float32)
        h = jnp.maximum(h + b1_ref[f].astype(jnp.float32), 0.0)       # ReLU
        y = jnp.dot(h.astype(w2_ref.dtype), w2_ref[f],
                    preferred_element_type=jnp.float32)
        return y + b2_ref[f].astype(jnp.float32)

    cur = x_ref[...].astype(jnp.float32)
    if num_fragments <= _FUSED_UNROLL_MAX:
        for f in range(num_fragments):          # small F: static unroll
            cur = one_fragment(f, cur)
    else:                                       # large F: compact loop body
        cur = jax.lax.fori_loop(0, num_fragments, one_fragment, cur)
    o_ref[...] = cur.astype(o_ref.dtype)


# ---------------------------------------------------------------------------
# Streamed fallback: 1-D grid over fragment GROUPS (K fragments per step).
# Running activation lives in a float32 VMEM scratch; biases are VMEM-resident.
# ---------------------------------------------------------------------------
def _streamed_kernel(x_ref, w1_ref, b1_ref, w2_ref, b2_ref, o_ref, acc_ref,
                     *, frags_per_step, num_fragments):
    g = pl.program_id(0)

    @pl.when(g == 0)
    def _():
        acc_ref[...] = x_ref[...].astype(jnp.float32)

    needs_mask = (num_fragments % frags_per_step) != 0
    cur = acc_ref[...]
    base = g * frags_per_step
    for k in range(frags_per_step):             # static unroll (K small)
        f = base + k
        h = jnp.dot(cur.astype(w1_ref.dtype), w1_ref[k],
                    preferred_element_type=jnp.float32)
        h = jnp.maximum(h + b1_ref[f].astype(jnp.float32), 0.0)       # ReLU
        y = jnp.dot(h.astype(w2_ref.dtype), w2_ref[k],
                    preferred_element_type=jnp.float32)
        y = y + b2_ref[f].astype(jnp.float32)
        if needs_mask:                           # skip zero-padded tail fragments
            cur = jnp.where(f < num_fragments, y, cur)
        else:
            cur = y
    acc_ref[...] = cur
    o_ref[...] = cur.astype(o_ref.dtype)


def cognitive_graph_forward(x, w1, b1, w2, b2, *, weights_dtype=None,
                            force_streamed=False, frags_per_step=8):
    """Sequential FragmentCell chain.

    x: (B, D); w1: (F, D, H); b1: (F, H); w2: (F, H, D); b2: (F, D).
    """
    B, D = x.shape
    F = w1.shape[0]
    if F == 0:
        # Empty graph: the PyTorch module returns the input unchanged.
        return x
    H = w1.shape[2]

    # Optional bf16 weight cast (halves HBM/VMEM weight bytes; f32 accumulation
    # preserved via preferred_element_type on the dots).
    if weights_dtype is not None:
        w1 = w1.astype(weights_dtype)
        w2 = w2.astype(weights_dtype)

    # Biases as (F, 1, ·) so per-fragment reads are clean 2-D (1, H)/(1, D).
    b1r = b1.reshape(F, 1, H)
    b2r = b2.reshape(F, 1, D)

    budget = _vmem_budget_bytes()
    out_bytes = B * D * x.dtype.itemsize
    in_bytes = sum(int(a.size) * a.dtype.itemsize for a in (x, w1, b1r, w2, b2r))
    act_bytes = 8 * B * max(D, H) * 4            # generous f32 intermediates
    flops = 4 * F * B * D * H                    # 2 matmuls/fragment, 2*B*D*H each
    cost = pl.CostEstimate(flops=flops, transcendentals=0,
                           bytes_accessed=int(in_bytes + out_bytes))

    use_fused = (not force_streamed) and (in_bytes + out_bytes + act_bytes <= budget)

    if use_fused:
        # TODO(synk): for large B on v7x add a leading "parallel" batch-tile grid
        # axis so both TensorCores are fed.
        return pl.pallas_call(
            functools.partial(_fused_kernel, num_fragments=F),
            out_shape=jax.ShapeDtypeStruct((B, D), x.dtype),
            in_specs=[pl.BlockSpec(memory_space=pltpu.MemorySpace.VMEM)] * 5,
            out_specs=pl.BlockSpec(memory_space=pltpu.MemorySpace.VMEM),
            compiler_params=pltpu.CompilerParams(vmem_limit_bytes=budget),
            cost_estimate=cost,
        )(x, w1, b1r, w2, b2r)

    # ---------------- streamed fallback ----------------
    K = max(1, min(int(frags_per_step), F))
    num_groups = pl.cdiv(F, K)
    F_pad = num_groups * K
    if F_pad != F:
        pad3 = ((0, F_pad - F), (0, 0), (0, 0))
        w1 = jnp.pad(w1, pad3)
        w2 = jnp.pad(w2, pad3)
        b1r = jnp.pad(b1r, pad3)
        b2r = jnp.pad(b2r, pad3)

    grid_spec = pltpu.PrefetchScalarGridSpec(
        num_scalar_prefetch=0,
        grid=(num_groups,),
        in_specs=[
            # x: constant block index -> DMA'd once, stays VMEM-resident.
            pl.BlockSpec((B, D), lambda g: (0, 0)),
            # Weights: K fragments per step (last two dims = full extents).
            # TODO(synk): pipeline_mode=pl.Buffered(3) if DMA latency is exposed.
            pl.BlockSpec((K, D, H), lambda g: (g, 0, 0)),
            # Biases: fully VMEM-resident (no per-step sub-KiB DMAs).
            pl.BlockSpec((F_pad, 1, H), lambda g: (0, 0, 0)),
            pl.BlockSpec((K, H, D), lambda g: (g, 0, 0)),
            pl.BlockSpec((F_pad, 1, D), lambda g: (0, 0, 0)),
        ],
        out_specs=pl.BlockSpec((B, D), lambda g: (0, 0)),
        scratch_shapes=[pltpu.VMEM((B, D), jnp.float32)],   # f32 running activation
    )
    return pl.pallas_call(
        functools.partial(_streamed_kernel, frags_per_step=K, num_fragments=F),
        out_shape=jax.ShapeDtypeStruct((B, D), x.dtype),
        grid_spec=grid_spec,
        compiler_params=pltpu.CompilerParams(
            dimension_semantics=("arbitrary",),   # sequential fragment chain
            vmem_limit_bytes=budget,
        ),
        cost_estimate=cost,
    )(x, w1, b1r, w2, b2r)


def reference_forward(x, w1, b1, w2, b2):
    cur = x.astype(jnp.float32)
    for f in range(w1.shape[0]):
        h = jnp.maximum(cur @ w1[f].astype(jnp.float32) + b1[f], 0.0)
        cur = h @ w2[f].astype(jnp.float32) + b2[f]
    return cur.astype(x.dtype)


if __name__ == "__main__":
    # FragmentCell-consistent small shapes: batch=8, dim=32, hidden=64, 3 fragments.
    B, D, H, F = 8, 32, 64, 3
    key = jax.random.PRNGKey(0)
    kx, k1, k2, k3, k4, k5 = jax.random.split(key, 6)

    x = jax.random.normal(kx, (B, D), dtype=jnp.float32)
    w1 = jax.random.normal(k1, (F, D, H), dtype=jnp.float32) * 0.1
    b1 = jax.random.normal(k2, (F, H), dtype=jnp.float32) * 0.01
    w2 = jax.random.normal(k3, (F, H, D), dtype=jnp.float32) * 0.1
    b2 = jax.random.normal(k4, (F, D), dtype=jnp.float32) * 0.01

    ref = reference_forward(x, w1, b1, w2, b2)

    # 1) Fused path (all fragment weights VMEM-resident, single invocation).
    out_fused = jax.block_until_ready(cognitive_graph_forward(x, w1, b1, w2, b2))
    assert out_fused.shape == (B, D)
    assert jnp.allclose(out_fused, ref, atol=2e-2, rtol=2e-2), "fused mismatch"

    # 2) Streamed fallback (grid over fragment groups), forced for coverage.
    out_str = jax.block_until_ready(
        cognitive_graph_forward(x, w1, b1, w2, b2, force_streamed=True))
    assert out_str.shape == (B, D)
    assert jnp.allclose(out_str, ref, atol=2e-2, rtol=2e-2), "streamed mismatch"

    # 3) Streamed with fragment grouping + ragged-tail masking (F=10, K=4).
    F2 = 10
    k5a, k5b, k5c, k5d = jax.random.split(k5, 4)
    w1b = jax.random.normal(k5a, (F2, D, H), dtype=jnp.float32) * 0.2
    b1b = jax.random.normal(k5b, (F2, H), dtype=jnp.float32) * 0.01
    w2b = jax.random.normal(k5c, (F2, H, D), dtype=jnp.float32) * 0.2
    b2b = jax.random.normal(k5d, (F2, D), dtype=jnp.float32) * 0.01
    ref2 = reference_forward(x, w1b, b1b, w2b, b2b)
    out_str2 = jax.block_until_ready(
        cognitive_graph_forward(x, w1b, b1b, w2b, b2b,
                                force_streamed=True, frags_per_step=4))
    assert out_str2.shape == (B, D)
    assert jnp.allclose(out_str2, ref2, atol=1e-1, rtol=1e-1), "grouped streamed mismatch"

    # 4) bf16 weights (halved weight bytes), f32 accumulation on the MXU.
    ref_bf = reference_forward(
        x, w1.astype(jnp.bfloat16).astype(jnp.float32), b1,
        w2.astype(jnp.bfloat16).astype(jnp.float32), b2)
    out_bf = jax.block_until_ready(
        cognitive_graph_forward(x, w1, b1, w2, b2, weights_dtype=jnp.bfloat16))
    assert out_bf.shape == (B, D)
    assert jnp.allclose(out_bf, ref_bf, atol=5e-2, rtol=5e-2), "bf16 mismatch"

    print("KERNEL_OK")
</pallas_src>

<mosaic_0001>
module attributes {stable_mosaic.version = 11 : i64} {
  func.func @_fused_kernel(%arg0: memref<8x32xf32, #tpu.memory_space<vmem>>, %arg1: memref<3x32x64xf32, #tpu.memory_space<vmem>>, %arg2: memref<3x1x64xf32, #tpu.memory_space<vmem>>, %arg3: memref<3x64x32xf32, #tpu.memory_space<vmem>>, %arg4: memref<3x1x32xf32, #tpu.memory_space<vmem>>, %arg5: memref<8x32xf32, #tpu.memory_space<vmem>>) attributes {dimension_semantics = [], scalar_prefetch = 0 : i64, scratch_operands = 0 : i64, tpu.core_type = #tpu.core_type<tc>} {
    %c0 = arith.constant 0 : index
    %c0_0 = arith.constant 0 : index
    %0 = vector.load %arg0[%c0, %c0_0] : memref<8x32xf32, #tpu.memory_space<vmem>>, vector<8x32xf32>
    %c0_1 = arith.constant 0 : index
    %c0_2 = arith.constant 0 : index
    %c0_3 = arith.constant 0 : index
    %1 = vector.load %arg1[%c0_1, %c0_2, %c0_3] : memref<3x32x64xf32, #tpu.memory_space<vmem>>, vector<1x32x64xf32>
    %2 = vector.shape_cast %1 : vector<1x32x64xf32> to vector<32x64xf32>
    %cst = arith.constant dense<0.000000e+00> : vector<8x64xf32>
    %3 = tpu.matmul %0, %2, %cst {dimension_numbers = #tpu.dot_dimension_numbers<[1], [0], [0], [1], [0, 0, 1, 1], [], []>} : vector<8x32xf32>, vector<32x64xf32>, vector<8x64xf32> -> vector<8x64xf32>
    %c0_4 = arith.constant 0 : index
    %c0_5 = arith.constant 0 : index
    %c0_6 = arith.constant 0 : index
    %4 = vector.load %arg2[%c0_4, %c0_5, %c0_6] : memref<3x1x64xf32, #tpu.memory_space<vmem>>, vector<1x1x64xf32>
    %5 = vector.shape_cast %4 : vector<1x1x64xf32> to vector<1x64xf32>
    %6 = vector.broadcast %5 : vector<1x64xf32> to vector<8x64xf32>
    %7 = arith.addf %3, %6 : vector<8x64xf32>
    %cst_7 = arith.constant 0.000000e+00 : f32
    %8 = vector.broadcast %cst_7 : f32 to vector<8x64xf32>
    %9 = arith.maximumf %7, %8 : vector<8x64xf32>
    %c0_8 = arith.constant 0 : index
    %c0_9 = arith.constant 0 : index
    %c0_10 = arith.constant 0 : index
    %10 = vector.load %arg3[%c0_8, %c0_9, %c0_10] : memref<3x64x32xf32, #tpu.memory_space<vmem>>, vector<1x64x32xf32>
    %11 = vector.shape_cast %10 : vector<1x64x32xf32> to vector<64x32xf32>
    %cst_11 = arith.constant dense<0.000000e+00> : vector<8x32xf32>
    %12 = tpu.matmul %9, %11, %cst_11 {dimension_numbers = #tpu.dot_dimension_numbers<[1], [0], [0], [1], [0, 0, 1, 1], [], []>} : vector<8x64xf32>, vector<64x32xf32>, vector<8x32xf32> -> vector<8x32xf32>
    %c0_12 = arith.constant 0 : index
    %c0_13 = arith.constant 0 : index
    %c0_14 = arith.constant 0 : index
    %13 = vector.load %arg4[%c0_12, %c0_13, %c0_14] : memref<3x1x32xf32, #tpu.memory_space<vmem>>, vector<1x1x32xf32>
    %14 = vector.shape_cast %13 : vector<1x1x32xf32> to vector<1x32xf32>
    %15 = vector.broadcast %14 : vector<1x32xf32> to vector<8x32xf32>
    %16 = arith.addf %12, %15 : vector<8x32xf32>
    %c1 = arith.constant 1 : index
    %c0_15 = arith.constant 0 : index
    %c0_16 = arith.constant 0 : index
    %17 = vector.load %arg1[%c1, %c0_15, %c0_16] : memref<3x32x64xf32, #tpu.memory_space<vmem>>, vector<1x32x64xf32>
    %18 = vector.shape_cast %17 : vector<1x32x64xf32> to vector<32x64xf32>
    %cst_17 = arith.constant dense<0.000000e+00> : vector<8x64xf32>
    %19 = tpu.matmul %16, %18, %cst_17 {dimension_numbers = #tpu.dot_dimension_numbers<[1], [0], [0], [1], [0, 0, 1, 1], [], []>} : vector<8x32xf32>, vector<32x64xf32>, vector<8x64xf32> -> vector<8x64xf32>
    %c1_18 = arith.constant 1 : index
    %c0_19 = arith.constant 0 : index
    %c0_20 = arith.constant 0 : index
    %20 = vector.load %arg2[%c1_18, %c0_19, %c0_20] : memref<3x1x64xf32, #tpu.memory_space<vmem>>, vector<1x1x64xf32>
    %21 = vector.shape_cast %20 : vector<1x1x64xf32> to vector<1x64xf32>
    %22 = vector.broadcast %21 : vector<1x64xf32> to vector<8x64xf32>
    %23 = arith.addf %19, %22 : vector<8x64xf32>
    %cst_21 = arith.constant 0.000000e+00 : f32
    %24 = vector.broadcast %cst_21 : f32 to vector<8x64xf32>
    %25 = arith.maximumf %23, %24 : vector<8x64xf32>
    %c1_22 = arith.constant 1 : index
    %c0_23 = arith.constant 0 : index
    %c0_24 = arith.constant 0 : index
    %26 = vector.load %arg3[%c1_22, %c0_23, %c0_24] : memref<3x64x32xf32, #tpu.memory_space<vmem>>, vector<1x64x32xf32>
    %27 = vector.shape_cast %26 : vector<1x64x32xf32> to vector<64x32xf32>
    %cst_25 = arith.constant dense<0.000000e+00> : vector<8x32xf32>
    %28 = tpu.matmul %25, %27, %cst_25 {dimension_numbers = #tpu.dot_dimension_numbers<[1], [0], [0], [1], [0, 0, 1, 1], [], []>} : vector<8x64xf32>, vector<64x32xf32>, vector<8x32xf32> -> vector<8x32xf32>
    %c1_26 = arith.constant 1 : index
    %c0_27 = arith.constant 0 : index
    %c0_28 = arith.constant 0 : index
    %29 = vector.load %arg4[%c1_26, %c0_27, %c0_28] : memref<3x1x32xf32, #tpu.memory_space<vmem>>, vector<1x1x32xf32>
    %30 = vector.shape_cast %29 : vector<1x1x32xf32> to vector<1x32xf32>
    %31 = vector.broadcast %30 : vector<1x32xf32> to vector<8x32xf32>
    %32 = arith.addf %28, %31 : vector<8x32xf32>
    %c2 = arith.constant 2 : index
    %c0_29 = arith.constant 0 : index
    %c0_30 = arith.constant 0 : index
    %33 = vector.load %arg1[%c2, %c0_29, %c0_30] : memref<3x32x64xf32, #tpu.memory_space<vmem>>, vector<1x32x64xf32>
    %34 = vector.shape_cast %33 : vector<1x32x64xf32> to vector<32x64xf32>
    %cst_31 = arith.constant dense<0.000000e+00> : vector<8x64xf32>
    %35 = tpu.matmul %32, %34, %cst_31 {dimension_numbers = #tpu.dot_dimension_numbers<[1], [0], [0], [1], [0, 0, 1, 1], [], []>} : vector<8x32xf32>, vector<32x64xf32>, vector<8x64xf32> -> vector<8x64xf32>
    %c2_32 = arith.constant 2 : index
    %c0_33 = arith.constant 0 : index
    %c0_34 = arith.constant 0 : index
    %36 = vector.load %arg2[%c2_32, %c0_33, %c0_34] : memref<3x1x64xf32, #tpu.memory_space<vmem>>, vector<1x1x64xf32>
    %37 = vector.shape_cast %36 : vector<1x1x64xf32> to vector<1x64xf32>
    %38 = vector.broadcast %37 : vector<1x64xf32> to vector<8x64xf32>
    %39 = arith.addf %35, %38 : vector<8x64xf32>
    %cst_35 = arith.constant 0.000000e+00 : f32
    %40 = vector.broadcast %cst_35 : f32 to vector<8x64xf32>
    %41 = arith.maximumf %39, %40 : vector<8x64xf32>
    %c2_36 = arith.constant 2 : index
    %c0_37 = arith.constant 0 : index
    %c0_38 = arith.constant 0 : index
    %42 = vector.load %arg3[%c2_36, %c0_37, %c0_38] : memref<3x64x32xf32, #tpu.memory_space<vmem>>, vector<1x64x32xf32>
    %43 = vector.shape_cast %42 : vector<1x64x32xf32> to vector<64x32xf32>
    %cst_39 = arith.constant dense<0.000000e+00> : vector<8x32xf32>
    %44 = tpu.matmul %41, %43, %cst_39 {dimension_numbers = #tpu.dot_dimension_numbers<[1], [0], [0], [1], [0, 0, 1, 1], [], []>} : vector<8x64xf32>, vector<64x32xf32>, vector<8x32xf32> -> vector<8x32xf32>
    %c2_40 = arith.constant 2 : index
    %c0_41 = arith.constant 0 : index
    %c0_42 = arith.constant 0 : index
    %45 = vector.load %arg4[%c2_40, %c0_41, %c0_42] : memref<3x1x32xf32, #tpu.memory_space<vmem>>, vector<1x1x32xf32>
    %46 = vector.shape_cast %45 : vector<1x1x32xf32> to vector<1x32xf32>
    %47 = vector.broadcast %46 : vector<1x32xf32> to vector<8x32xf32>
    %48 = arith.addf %44, %47 : vector<8x32xf32>
    %c0_43 = arith.constant 0 : index
    %c0_44 = arith.constant 0 : index
    %49 = vector.load %arg5[%c0_43, %c0_44] : memref<8x32xf32, #tpu.memory_space<vmem>>, vector<8x32xf32>
    tpu.vector_store %arg5[%c0_43, %c0_44], %48 {strides = array<i32>} : memref<8x32xf32, #tpu.memory_space<vmem>>, vector<8x32xf32>,
    return
  }
}

</mosaic_0001>

<llo_original>
// kernel: tpu_custom_call.1
$region0: #{tpu_custom_call.1}
  #allocation0 [shape = 'u32[]', space=smem, size = 0x4, offset = 0x4, fixed_abs, tag = 'smem constant byte address 0x4 - core index']
  #allocation1 [shape = 'u32[144,128]{1,0:T(1,128)}', space=vmem, size = 0x12000, scoped, tag = 'internal scratch']
  %s0 = inlined_call_operand.vmem [shape: f32[8,32], index: 0, kind: input, shape index: {}]
  %s1 = inlined_call_operand.vmem [shape: f32[3,32,64], index: 1, kind: input, shape index: {}]
  %s2 = inlined_call_operand.vmem [shape: f32[3,1,64], index: 2, kind: input, shape index: {}]
  %s3 = inlined_call_operand.vmem [shape: f32[3,64,32], index: 3, kind: input, shape index: {}]
  %s4 = inlined_call_operand.vmem [shape: f32[3,1,32], index: 4, kind: input, shape index: {}]
  %s5 = inlined_call_operand.hbm [shape: f32[8,32], index: 5, kind: output, shape index: {}]
  %s6 = sld [smem:[#allocation0]]
  $region30: #{tpu_custom_call.1} parent=0
    _
  %s8 = ssub.s32 1, %s6
  %s9 = scalar_select 0, %s8, %s6
  $region1: #{tpu_custom_call.1} parent=0
    #allocation2 [shape = 'u8[4096]{0}', space=vmem, size = 0x1000, scoped, tag = 'output window, operand 0, single buffered']
    #allocation3 [shape = 's32[1]{0}', space=sflag, size = 0x4, scoped, tag = 'scoped memory for tpu_custom_call.1']
    %10 = vsyncpa [#allocation3], 0
    // Predicated region
    $region2: #{tpu_custom_call.1} parent=1 // pred_check
      _
    $region3: #{tpu_custom_call.1} parent=1 // pred_check_branch
      %12 = sbr.rel (0) target = $region5
    $region4: #{tpu_custom_call.1} parent=1 // pred_region
      _
    $region5: #{tpu_custom_call.1} parent=1 // pred_fallthru
      _
    // Predicated region
    $region6: #{tpu_custom_call.1} parent=1 // pred_check
      _
    $region7: #{tpu_custom_call.1} parent=1 // pred_check_branch
      %14 = sbr.rel (0) target = $region9
    $region8: #{tpu_custom_call.1} parent=1 // pred_region
      _
    $region9: #{tpu_custom_call.1} parent=1 // pred_fallthru
      _
    // Predicated region
    $region10: #{tpu_custom_call.1} parent=1 // pred_check
      _
    $region11: #{tpu_custom_call.1} parent=1 // pred_check_branch
      %16 = sbr.rel (0) target = $region13
    $region12: #{tpu_custom_call.1} parent=1 // pred_region
      _
    $region13: #{tpu_custom_call.1} parent=1 // pred_fallthru
      _
    // Predicated region
    $region14: #{tpu_custom_call.1} parent=1 // pred_check
      _
    $region15: #{tpu_custom_call.1} parent=1 // pred_check_branch
      %18 = sbr.rel (0) target = $region17
    $region16: #{tpu_custom_call.1} parent=1 // pred_region
      _
    $region17: #{tpu_custom_call.1} parent=1 // pred_fallthru
      _
    // Predicated region
    $region18: #{tpu_custom_call.1} parent=1 // pred_check
      _
    $region19: #{tpu_custom_call.1} parent=1 // pred_check_branch
      %20 = sbr.rel (0) target = $region21
    $region20: #{tpu_custom_call.1} parent=1 // pred_region
      _
    $region21: #{tpu_custom_call.1} parent=1 // pred_fallthru
      _
    %v21 = vld [vmem:[%s0] sm:$0xff]
    %v22 = vld [vmem:[%s1] sm:$0xff]
    %v23 = vld [vmem:[%s1 + $0x8] sm:$0xff]
    %v24 = vld [vmem:[%s1 + $0x10] sm:$0xff]
    %v25 = vld [vmem:[%s1 + $0x18] sm:$0xff]
    %v26 = vld [vmem:[%s2] sm:$0x1]
    %v28 = vlaneseq
    %v29 = vshrl.u32 %v28, 7
    %v30 = vsub.s32 0, %v29
    %v31 = vrot.slane %v26, %v30
    %vm33 = vcmask 261120
    %v35 = vsel %vm33, %v21, 0
    %37 = vmatprep.subr.mxu0 0.0
    %38 = vmatpush1.msra.mxu0 %v22
    %39 = vmatprep.subr.mxu0 0.0
    %40 = vmatpush1.msra.mxu0 %v23
    %41 = vmatprep.subr.mxu0 0.0
    %42 = vmatpush1.msra.mxu0 %v24
    %43 = vmatprep.subr.mxu0 0.0
    %44 = vmatpush1.msra.mxu0 %v25
    %45 = vmatprep.subr.mxu0 0.0
    %46 = vmatpush1.msra.mxu0 0.0
    %47 = vmatprep.subr.mxu0 0.0
    %48 = vmatpush1.msra.mxu0 0.0
    %49 = vmatprep.subr.mxu0 0.0
    %50 = vmatpush1.msra.mxu0 0.0
    %51 = vmatprep.subr.mxu0 0.0
    %52 = vmatpush1.msra.mxu0 0.0
    %53 = vmatprep.subr.mxu0 0.0
    %54 = vmatpush1.msra.mxu0 0.0
    %55 = vmatprep.subr.mxu0 0.0
    %56 = vmatpush1.msra.mxu0 0.0
    %57 = vmatprep.subr.mxu0 0.0
    %58 = vmatpush1.msra.mxu0 0.0
    %59 = vmatprep.subr.mxu0 0.0
    %60 = vmatpush1.msra.mxu0 0.0
    %61 = vmatprep.subr.mxu0 0.0
    %62 = vmatpush1.msra.mxu0 0.0
    %63 = vmatprep.subr.mxu0 0.0
    %64 = vmatpush1.msra.mxu0 0.0
    %65 = vmatprep.subr.mxu0 0.0
    %66 = vmatpush1.msra.mxu0 0.0
    %67 = vmatprep.subr.mxu0 0.0
    %68 = vmatpush1.msra.mxu0 0.0
    %69 = vmatprep.subr.mxu0 0.0
    %70 = vmatpush1.msra.mxu0 0.0
    %71 = vmatprep.subr.mxu0 0.0
    %72 = vmatpush1.msra.mxu0 0.0
    %73 = vmatprep.subr.mxu0 0.0
    %74 = vmatpush1.msra.mxu0 0.0
    %75 = vmatprep.subr.mxu0 0.0
    %76 = vmatpush1.msra.mxu0 0.0
    %77 = vmatprep.subr.mxu0 0.0
    %78 = vmatpush1.msra.mxu0 0.0
    %79 = vmatprep.subr.mxu0 0.0
    %80 = vmatpush1.msra.mxu0 0.0
    %81 = vmatprep.subr.mxu0 0.0
    %82 = vmatpush1.msra.mxu0 0.0
    %83 = vmatprep.subr.mxu0 0.0
    %84 = vmatpush1.msra.mxu0 0.0
    %85 = vmatprep.subr.mxu0 0.0
    %86 = vmatpush1.msra.mxu0 0.0
    %87 = vmatprep.subr.mxu0 0.0
    %88 = vmatpush1.msra.mxu0 0.0
    %89 = vmatprep.subr.mxu0 0.0
    %90 = vmatpush1.msra.mxu0 0.0
    %91 = vmatprep.subr.mxu0 0.0
    %92 = vmatpush1.msra.mxu0 0.0
    %93 = vmatprep.subr.mxu0 0.0
    %94 = vmatpush1.msra.mxu0 0.0
    %95 = vmatprep.subr.mxu0 0.0
    %96 = vmatpush1.msra.mxu0 0.0
    %97 = vmatprep.subr.mxu0 0.0
    %98 = vmatpush1.msra.mxu0 0.0
    %99 = vmatprep.subr.mxu0 0.0
    %100 = vmatpush1.msra.mxu0 0.0
    %101 = vmatprep.mubr.f32.mxu0 0.0
    %102 = vmatmul.mubr.f32.gmra.mrb[0].mxu0 %v35
    %v103 = vpop.f32.mrb[0].mxu0
    %v104 = vadd.f32 %v31, %v103
    %v105 = vpop.f32.mrb[0].mxu0
    %106 = vdwg.mxu0
    %v107 = vmax.f32 %v104, 0.0
    %v108 = vld [vmem:[%s3] sm:$0xff]
    %v109 = vld [vmem:[%s3 + $0x8] sm:$0xff]
    %v110 = vld [vmem:[%s3 + $0x10] sm:$0xff]
    %v111 = vld [vmem:[%s3 + $0x18] sm:$0xff]
    %v112 = vld [vmem:[%s3 + $0x20] sm:$0xff]
    %v113 = vld [vmem:[%s3 + $0x28] sm:$0xff]
    %v114 = vld [vmem:[%s3 + $0x30] sm:$0xff]
    %v115 = vld [vmem:[%s3 + $0x38] sm:$0xff]
    %v116 = vld [vmem:[%s4] sm:$0x1]
    %v118 = vlaneseq
    %v119 = vshrl.u32 %v118, 7
    %v120 = vsub.s32 0, %v119
    %v121 = vrot.slane %v116, %v120
    %vm123 = vcmask 523264
    %v125 = vsel %vm123, %v107, 0
    %127 = vmatprep.subr.mxu0 0.0
    %128 = vmatpush1.msra.mxu0 %v108
    %129 = vmatprep.subr.mxu0 0.0
    %130 = vmatpush1.msra.mxu0 %v109
    %131 = vmatprep.subr.mxu0 0.0
    %132 = vmatpush1.msra.mxu0 %v110
    %133 = vmatprep.subr.mxu0 0.0
    %134 = vmatpush1.msra.mxu0 %v111
    %135 = vmatprep.subr.mxu0 0.0
    %136 = vmatpush1.msra.mxu0 %v112
    %137 = vmatprep.subr.mxu0 0.0
    %138 = vmatpush1.msra.mxu0 %v113
    %139 = vmatprep.subr.mxu0 0.0
    %140 = vmatpush1.msra.mxu0 %v114
    %141 = vmatprep.subr.mxu0 0.0
    %142 = vmatpush1.msra.mxu0 %v115
    %143 = vmatprep.subr.mxu0 0.0
    %144 = vmatpush1.msra.mxu0 0.0
    %145 = vmatprep.subr.mxu0 0.0
    %146 = vmatpush1.msra.mxu0 0.0
    %147 = vmatprep.subr.mxu0 0.0
    %148 = vmatpush1.msra.mxu0 0.0
    %149 = vmatprep.subr.mxu0 0.0
    %150 = vmatpush1.msra.mxu0 0.0
    %151 = vmatprep.subr.mxu0 0.0
    %152 = vmatpush1.msra.mxu0 0.0
    %153 = vmatprep.subr.mxu0 0.0
    %154 = vmatpush1.msra.mxu0 0.0
    %155 = vmatprep.subr.mxu0 0.0
    %156 = vmatpush1.msra.mxu0 0.0
    %157 = vmatprep.subr.mxu0 0.0
    %158 = vmatpush1.msra.mxu0 0.0
    %159 = vmatprep.subr.mxu0 0.0
    %160 = vmatpush1.msra.mxu0 0.0
    %161 = vmatprep.subr.mxu0 0.0
    %162 = vmatpush1.msra.mxu0 0.0
    %163 = vmatprep.subr.mxu0 0.0
    %164 = vmatpush1.msra.mxu0 0.0
    %165 = vmatprep.subr.mxu0 0.0
    %166 = vmatpush1.msra.mxu0 0.0
    %167 = vmatprep.subr.mxu0 0.0
    %168 = vmatpush1.msra.mxu0 0.0
    %169 = vmatprep.subr.mxu0 0.0
    %170 = vmatpush1.msra.mxu0 0.0
    %171 = vmatprep.subr.mxu0 0.0
    %172 = vmatpush1.msra.mxu0 0.0
    %173 = vmatprep.subr.mxu0 0.0
    %174 = vmatpush1.msra.mxu0 0.0
    %175 = vmatprep.subr.mxu0 0.0
    %176 = vmatpush1.msra.mxu0 0.0
    %177 = vmatprep.subr.mxu0 0.0
    %178 = vmatpush1.msra.mxu0 0.0
    %179 = vmatprep.subr.mxu0 0.0
    %180 = vmatpush1.msra.mxu0 0.0
    %181 = vmatprep.subr.mxu0 0.0
    %182 = vmatpush1.msra.mxu0 0.0
    %183 = vmatprep.subr.mxu0 0.0
    %184 = vmatpush1.msra.mxu0 0.0
    %185 = vmatprep.subr.mxu0 0.0
    %186 = vmatpush1.msra.mxu0 0.0
    %187 = vmatprep.subr.mxu0 0.0
    %188 = vmatpush1.msra.mxu0 0.0
    %189 = vmatprep.subr.mxu0 0.0
    %190 = vmatpush1.msra.mxu0 0.0
    %191 = vmatprep.mubr.f32.mxu0 0.0
    %192 = vmatmul.mubr.f32.gmra.mrb[0].mxu0 %v125
    %v193 = vpop.f32.mrb[0].mxu0
    %v194 = vadd.f32 %v121, %v193
    %v195 = vpop.f32.mrb[0].mxu0
    %196 = vdwg.mxu0
    %s197 = scalar_lea.vmem %s1, 32
    %v198 = vld [vmem:[%s197] sm:$0xff]
    %v199 = vld [vmem:[%s197 + $0x8] sm:$0xff]
    %v200 = vld [vmem:[%s197 + $0x10] sm:$0xff]
    %v201 = vld [vmem:[%s197 + $0x18] sm:$0xff]
    %s202 = scalar_lea.vmem %s2, 1
    %v203 = vld [vmem:[%s202] sm:$0x1]
    %v205 = vlaneseq
    %v206 = vshrl.u32 %v205, 7
    %v207 = vsub.s32 0, %v206
    %v208 = vrot.slane %v203, %v207
    %v211 = vsel %vm33, %v194, 0
    %213 = vmatprep.subr.mxu0 0.0
    %214 = vmatpush1.msra.mxu0 %v198
    %215 = vmatprep.subr.mxu0 0.0
    %216 = vmatpush1.msra.mxu0 %v199
    %217 = vmatprep.subr.mxu0 0.0
    %218 = vmatpush1.msra.mxu0 %v200
    %219 = vmatprep.subr.mxu0 0.0
    %220 = vmatpush1.msra.mxu0 %v201
    %221 = vmatprep.subr.mxu0 0.0
    %222 = vmatpush1.msra.mxu0 0.0
    %223 = vmatprep.subr.mxu0 0.0
    %224 = vmatpush1.msra.mxu0 0.0
    %225 = vmatprep.subr.mxu0 0.0
    %226 = vmatpush1.msra.mxu0 0.0
    %227 = vmatprep.subr.mxu0 0.0
    %228 = vmatpush1.msra.mxu0 0.0
    %229 = vmatprep.subr.mxu0 0.0
    %230 = vmatpush1.msra.mxu0 0.0
    %231 = vmatprep.subr.mxu0 0.0
    %232 = vmatpush1.msra.mxu0 0.0
    %233 = vmatprep.subr.mxu0 0.0
    %234 = vmatpush1.msra.mxu0 0.0
    %235 = vmatprep.subr.mxu0 0.0
    %236 = vmatpush1.msra.mxu0 0.0
    %237 = vmatprep.subr.mxu0 0.0
    %238 = vmatpush1.msra.mxu0 0.0
    %239 = vmatprep.subr.mxu0 0.0
    %240 = vmatpush1.msra.mxu0 0.0
    %241 = vmatprep.subr.mxu0 0.0
    %242 = vmatpush1.msra.mxu0 0.0
    %243 = vmatprep.subr.mxu0 0.0
    %244 = vmatpush1.msra.mxu0 0.0
    %245 = vmatprep.subr.mxu0 0.0
    %246 = vmatpush1.msra.mxu0 0.0
    %247 = vmatprep.subr.mxu0 0.0
    %248 = vmatpush1.msra.mxu0 0.0
    %249 = vmatprep.subr.mxu0 0.0
    %250 = vmatpush1.msra.mxu0 0.0
    %251 = vmatprep.subr.mxu0 0.0
    %252 = vmatpush1.msra.mxu0 0.0
    %253 = vmatprep.subr.mxu0 0.0
    %254 = vmatpush1.msra.mxu0 0.0
    %255 = vmatprep.subr.mxu0 0.0
    %256 = vmatpush1.msra.mxu0 0.0
    %257 = vmatprep.subr.mxu0 0.0
    %258 = vmatpush1.msra.mxu0 0.0
    %259 = vmatprep.subr.mxu0 0.0
    %260 = vmatpush1.msra.mxu0 0.0
    %261 = vmatprep.subr.mxu0 0.0
    %262 = vmatpush1.msra.mxu0 0.0
    %263 = vmatprep.subr.mxu0 0.0
    %264 = vmatpush1.msra.mxu0 0.0
    %265 = vmatprep.subr.mxu0 0.0
    %266 = vmatpush1.msra.mxu0 0.0
    %267 = vmatprep.subr.mxu0 0.0
    %268 = vmatpush1.msra.mxu0 0.0
    %269 = vmatprep.subr.mxu0 0.0
    %270 = vmatpush1.msra.mxu0 0.0
    %271 = vmatprep.subr.mxu0 0.0
    %272 = vmatpush1.msra.mxu0 0.0
    %273 = vmatprep.subr.mxu0 0.0
    %274 = vmatpush1.msra.mxu0 0.0
    %275 = vmatprep.subr.mxu0 0.0
    %276 = vmatpush1.msra.mxu0 0.0
    %277 = vmatprep.mubr.f32.mxu0 0.0
    %278 = vmatmul.mubr.f32.gmra.mrb[0].mxu0 %v211
    %v279 = vpop.f32.mrb[0].mxu0
    %v280 = vadd.f32 %v208, %v279
    %v281 = vpop.f32.mrb[0].mxu0
    %282 = vdwg.mxu0
    %v283 = vmax.f32 %v280, 0.0
    %s284 = scalar_lea.vmem %s3, 64
    %v285 = vld [vmem:[%s284] sm:$0xff]
    %v286 = vld [vmem:[%s284 + $0x8] sm:$0xff]
    %v287 = vld [vmem:[%s284 + $0x10] sm:$0xff]
    %v288 = vld [vmem:[%s284 + $0x18] sm:$0xff]
    %v289 = vld [vmem:[%s284 + $0x20] sm:$0xff]
    %v290 = vld [vmem:[%s284 + $0x28] sm:$0xff]
    %v291 = vld [vmem:[%s284 + $0x30] sm:$0xff]
    %v292 = vld [vmem:[%s284 + $0x38] sm:$0xff]
    %s293 = scalar_lea.vmem %s4, 1
    %v294 = vld [vmem:[%s293] sm:$0x1]
    %v296 = vlaneseq
    %v297 = vshrl.u32 %v296, 7
    %v298 = vsub.s32 0, %v297
    %v299 = vrot.slane %v294, %v298
    %v302 = vsel %vm123, %v283, 0
    %304 = vmatprep.subr.mxu0 0.0
    %305 = vmatpush1.msra.mxu0 %v285
    %306 = vmatprep.subr.mxu0 0.0
    %307 = vmatpush1.msra.mxu0 %v286
    %308 = vmatprep.subr.mxu0 0.0
    %309 = vmatpush1.msra.mxu0 %v287
    %310 = vmatprep.subr.mxu0 0.0
    %311 = vmatpush1.msra.mxu0 %v288
    %312 = vmatprep.subr.mxu0 0.0
    %313 = vmatpush1.msra.mxu0 %v289
    %314 = vmatprep.subr.mxu0 0.0
    %315 = vmatpush1.msra.mxu0 %v290
    %316 = vmatprep.subr.mxu0 0.0
    %317 = vmatpush1.msra.mxu0 %v291
    %318 = vmatprep.subr.mxu0 0.0
    %319 = vmatpush1.msra.mxu0 %v292
    %320 = vmatprep.subr.mxu0 0.0
    %321 = vmatpush1.msra.mxu0 0.0
    %322 = vmatprep.subr.mxu0 0.0
    %323 = vmatpush1.msra.mxu0 0.0
    %324 = vmatprep.subr.mxu0 0.0
    %325 = vmatpush1.msra.mxu0 0.0
    %326 = vmatprep.subr.mxu0 0.0
    %327 = vmatpush1.msra.mxu0 0.0
    %328 = vmatprep.subr.mxu0 0.0
    %329 = vmatpush1.msra.mxu0 0.0
    %330 = vmatprep.subr.mxu0 0.0
    %331 = vmatpush1.msra.mxu0 0.0
    %332 = vmatprep.subr.mxu0 0.0
    %333 = vmatpush1.msra.mxu0 0.0
    %334 = vmatprep.subr.mxu0 0.0
    %335 = vmatpush1.msra.mxu0 0.0
    %336 = vmatprep.subr.mxu0 0.0
    %337 = vmatpush1.msra.mxu0 0.0
    %338 = vmatprep.subr.mxu0 0.0
    %339 = vmatpush1.msra.mxu0 0.0
    %340 = vmatprep.subr.mxu0 0.0
    %341 = vmatpush1.msra.mxu0 0.0
    %342 = vmatprep.subr.mxu0 0.0
    %343 = vmatpush1.msra.mxu0 0.0
    %344 = vmatprep.subr.mxu0 0.0
    %345 = vmatpush1.msra.mxu0 0.0
    %346 = vmatprep.subr.mxu0 0.0
    %347 = vmatpush1.msra.mxu0 0.0
    %348 = vmatprep.subr.mxu0 0.0
    %349 = vmatpush1.msra.mxu0 0.0
    %350 = vmatprep.subr.mxu0 0.0
    %351 = vmatpush1.msra.mxu0 0.0
    %352 = vmatprep.subr.mxu0 0.0
    %353 = vmatpush1.msra.mxu0 0.0
    %354 = vmatprep.subr.mxu0 0.0
    %355 = vmatpush1.msra.mxu0 0.0
    %356 = vmatprep.subr.mxu0 0.0
    %357 = vmatpush1.msra.mxu0 0.0
    %358 = vmatprep.subr.mxu0 0.0
    %359 = vmatpush1.msra.mxu0 0.0
    %360 = vmatprep.subr.mxu0 0.0
    %361 = vmatpush1.msra.mxu0 0.0
    %362 = vmatprep.subr.mxu0 0.0
    %363 = vmatpush1.msra.mxu0 0.0
    %364 = vmatprep.subr.mxu0 0.0
    %365 = vmatpush1.msra.mxu0 0.0
    %366 = vmatprep.subr.mxu0 0.0
    %367 = vmatpush1.msra.mxu0 0.0
    %368 = vmatprep.mubr.f32.mxu0 0.0
    %369 = vmatmul.mubr.f32.gmra.mrb[0].mxu0 %v302
    %v370 = vpop.f32.mrb[0].mxu0
    %v371 = vadd.f32 %v299, %v370
    %v372 = vpop.f32.mrb[0].mxu0
    %373 = vdwg.mxu0
    %s374 = scalar_lea.vmem %s1, 64
    %v375 = vld [vmem:[%s374] sm:$0xff]
    %v376 = vld [vmem:[%s374 + $0x8] sm:$0xff]
    %v377 = vld [vmem:[%s374 + $0x10] sm:$0xff]
    %v378 = vld [vmem:[%s374 + $0x18] sm:$0xff]
    %s379 = scalar_lea.vmem %s2, 2
    %v380 = vld [vmem:[%s379] sm:$0x1]
    %v382 = vlaneseq
    %v383 = vshrl.u32 %v382, 7
    %v384 = vsub.s32 0, %v383
    %v385 = vrot.slane %v380, %v384
    %v388 = vsel %vm33, %v371, 0
    %390 = vmatprep.subr.mxu0 0.0
    %391 = vmatpush1.msra.mxu0 %v375
    %392 = vmatprep.subr.mxu0 0.0
    %393 = vmatpush1.msra.mxu0 %v376
    %394 = vmatprep.subr.mxu0 0.0
    %395 = vmatpush1.msra.mxu0 %v377
    %396 = vmatprep.subr.mxu0 0.0
    %397 = vmatpush1.msra.mxu0 %v378
    %398 = vmatprep.subr.mxu0 0.0
    %399 = vmatpush1.msra.mxu0 0.0
    %400 = vmatprep.subr.mxu0 0.0
    %401 = vmatpush1.msra.mxu0 0.0
    %402 = vmatprep.subr.mxu0 0.0
    %403 = vmatpush1.msra.mxu0 0.0
    %404 = vmatprep.subr.mxu0 0.0
    %405 = vmatpush1.msra.mxu0 0.0
    %406 = vmatprep.subr.mxu0 0.0
    %407 = vmatpush1.msra.mxu0 0.0
    %408 = vmatprep.subr.mxu0 0.0
    %409 = vmatpush1.msra.mxu0 0.0
    %410 = vmatprep.subr.mxu0 0.0
    %411 = vmatpush1.msra.mxu0 0.0
    %412 = vmatprep.subr.mxu0 0.0
    %413 = vmatpush1.msra.mxu0 0.0
    %414 = vmatprep.subr.mxu0 0.0
    %415 = vmatpush1.msra.mxu0 0.0
    %416 = vmatprep.subr.mxu0 0.0
    %417 = vmatpush1.msra.mxu0 0.0
    %418 = vmatprep.subr.mxu0 0.0
    %419 = vmatpush1.msra.mxu0 0.0
    %420 = vmatprep.subr.mxu0 0.0
    %421 = vmatpush1.msra.mxu0 0.0
    %422 = vmatprep.subr.mxu0 0.0
    %423 = vmatpush1.msra.mxu0 0.0
    %424 = vmatprep.subr.mxu0 0.0
    %425 = vmatpush1.msra.mxu0 0.0
    %426 = vmatprep.subr.mxu0 0.0
    %427 = vmatpush1.msra.mxu0 0.0
    %428 = vmatprep.subr.mxu0 0.0
    %429 = vmatpush1.msra.mxu0 0.0
    %430 = vmatprep.subr.mxu0 0.0
    %431 = vmatpush1.msra.mxu0 0.0
    %432 = vmatprep.subr.mxu0 0.0
    %433 = vmatpush1.msra.mxu0 0.0
    %434 = vmatprep.subr.mxu0 0.0
    %435 = vmatpush1.msra.mxu0 0.0
    %436 = vmatprep.subr.mxu0 0.0
    %437 = vmatpush1.msra.mxu0 0.0
    %438 = vmatprep.subr.mxu0 0.0
    %439 = vmatpush1.msra.mxu0 0.0
    %440 = vmatprep.subr.mxu0 0.0
    %441 = vmatpush1.msra.mxu0 0.0
    %442 = vmatprep.subr.mxu0 0.0
    %443 = vmatpush1.msra.mxu0 0.0
    %444 = vmatprep.subr.mxu0 0.0
    %445 = vmatpush1.msra.mxu0 0.0
    %446 = vmatprep.subr.mxu0 0.0
    %447 = vmatpush1.msra.mxu0 0.0
    %448 = vmatprep.subr.mxu0 0.0
    %449 = vmatpush1.msra.mxu0 0.0
    %450 = vmatprep.subr.mxu0 0.0
    %451 = vmatpush1.msra.mxu0 0.0
    %452 = vmatprep.subr.mxu0 0.0
    %453 = vmatpush1.msra.mxu0 0.0
    %454 = vmatprep.mubr.f32.mxu0 0.0
    %455 = vmatmul.mubr.f32.gmra.mrb[0].mxu0 %v388
    %v456 = vpop.f32.mrb[0].mxu0
    %v457 = vadd.f32 %v385, %v456
    %v458 = vpop.f32.mrb[0].mxu0
    %459 = vdwg.mxu0
    %v460 = vmax.f32 %v457, 0.0
    %s461 = scalar_lea.vmem %s3, 128
    %v462 = vld [vmem:[%s461] sm:$0xff]
    %v463 = vld [vmem:[%s461 + $0x8] sm:$0xff]
    %v464 = vld [vmem:[%s461 + $0x10] sm:$0xff]
    %v465 = vld [vmem:[%s461 + $0x18] sm:$0xff]
    %v466 = vld [vmem:[%s461 + $0x20] sm:$0xff]
    %v467 = vld [vmem:[%s461 + $0x28] sm:$0xff]
    %v468 = vld [vmem:[%s461 + $0x30] sm:$0xff]
    %v469 = vld [vmem:[%s461 + $0x38] sm:$0xff]
    %s470 = scalar_lea.vmem %s4, 2
    %v471 = vld [vmem:[%s470] sm:$0x1]
    %v473 = vlaneseq
    %v474 = vshrl.u32 %v473, 7
    %v475 = vsub.s32 0, %v474
    %v476 = vrot.slane %v471, %v475
    %v479 = vsel %vm123, %v460, 0
    %481 = vmatprep.subr.mxu0 0.0
    %482 = vmatpush1.msra.mxu0 %v462
    %483 = vmatprep.subr.mxu0 0.0
    %484 = vmatpush1.msra.mxu0 %v463
    %485 = vmatprep.subr.mxu0 0.0
    %486 = vmatpush1.msra.mxu0 %v464
    %487 = vmatprep.subr.mxu0 0.0
    %488 = vmatpush1.msra.mxu0 %v465
    %489 = vmatprep.subr.mxu0 0.0
    %490 = vmatpush1.msra.mxu0 %v466
    %491 = vmatprep.subr.mxu0 0.0
    %492 = vmatpush1.msra.mxu0 %v467
    %493 = vmatprep.subr.mxu0 0.0
    %494 = vmatpush1.msra.mxu0 %v468
    %495 = vmatprep.subr.mxu0 0.0
    %496 = vmatpush1.msra.mxu0 %v469
    %497 = vmatprep.subr.mxu0 0.0
    %498 = vmatpush1.msra.mxu0 0.0
    %499 = vmatprep.subr.mxu0 0.0
    %500 = vmatpush1.msra.mxu0 0.0
    %501 = vmatprep.subr.mxu0 0.0
    %502 = vmatpush1.msra.mxu0 0.0
    %503 = vmatprep.subr.mxu0 0.0
    %504 = vmatpush1.msra.mxu0 0.0
    %505 = vmatprep.subr.mxu0 0.0
    %506 = vmatpush1.msra.mxu0 0.0
    %507 = vmatprep.subr.mxu0 0.0
    %508 = vmatpush1.msra.mxu0 0.0
    %509 = vmatprep.subr.mxu0 0.0
    %510 = vmatpush1.msra.mxu0 0.0
    %511 = vmatprep.subr.mxu0 0.0
    %512 = vmatpush1.msra.mxu0 0.0
    %513 = vmatprep.subr.mxu0 0.0
    %514 = vmatpush1.msra.mxu0 0.0
    %515 = vmatprep.subr.mxu0 0.0
    %516 = vmatpush1.msra.mxu0 0.0
    %517 = vmatprep.subr.mxu0 0.0
    %518 = vmatpush1.msra.mxu0 0.0
    %519 = vmatprep.subr.mxu0 0.0
    %520 = vmatpush1.msra.mxu0 0.0
    %521 = vmatprep.subr.mxu0 0.0
    %522 = vmatpush1.msra.mxu0 0.0
    %523 = vmatprep.subr.mxu0 0.0
    %524 = vmatpush1.msra.mxu0 0.0
    %525 = vmatprep.subr.mxu0 0.0
    %526 = vmatpush1.msra.mxu0 0.0
    %527 = vmatprep.subr.mxu0 0.0
    %528 = vmatpush1.msra.mxu0 0.0
    %529 = vmatprep.subr.mxu0 0.0
    %530 = vmatpush1.msra.mxu0 0.0
    %531 = vmatprep.subr.mxu0 0.0
    %532 = vmatpush1.msra.mxu0 0.0
    %533 = vmatprep.subr.mxu0 0.0
    %534 = vmatpush1.msra.mxu0 0.0
    %535 = vmatprep.subr.mxu0 0.0
    %536 = vmatpush1.msra.mxu0 0.0
    %537 = vmatprep.subr.mxu0 0.0
    %538 = vmatpush1.msra.mxu0 0.0
    %539 = vmatprep.subr.mxu0 0.0
    %540 = vmatpush1.msra.mxu0 0.0
    %541 = vmatprep.subr.mxu0 0.0
    %542 = vmatpush1.msra.mxu0 0.0
    %543 = vmatprep.subr.mxu0 0.0
    %544 = vmatpush1.msra.mxu0 0.0
    %545 = vmatprep.mubr.f32.mxu0 0.0
    %546 = vmatmul.mubr.f32.gmra.mrb[0].mxu0 %v479
    %v547 = vpop.f32.mrb[0].mxu0
    %v548 = vadd.f32 %v476, %v547
    %v549 = vpop.f32.mrb[0].mxu0
    %550 = vdwg.mxu0
    %551 = vst.msk [vmem:[#allocation2] sm:$0xff] %vm33, %v548
    // Predicated region
    $region22: #{tpu_custom_call.1} parent=1 // pred_check
      _
    $region23: #{tpu_custom_call.1} parent=1 // pred_check_branch
      %553 = sbr.rel (0) target = $region25
    $region24: #{tpu_custom_call.1} parent=1 // pred_region
      %s555 = ssub.s32 128, 128
      %556 = vsyncadd [#allocation3], %s555
      %s558 = sshll.u32 [#allocation2], 4
      %s559 = int_to_ptr.vmem [resolvable:$true] %s558
      %561 = dma.vmem_to_hbm [thread:$0]  %s559, 128, %s5, [#allocation3]
    $region25: #{tpu_custom_call.1} parent=1 // pred_fallthru
      _
    // Predicated region
    $region26: #{tpu_custom_call.1} parent=1 // pred_check
      _
    $region27: #{tpu_custom_call.1} parent=1 // pred_check_branch
      %563 = sbr.rel (0) target = $region29
    $region28: #{tpu_custom_call.1} parent=1 // pred_region
      %564 = dma.done [#allocation3], 128
    $region29: #{tpu_custom_call.1} parent=1 // pred_fallthru
      _
    %565 = vsyncpa [#allocation3], 1

</llo_original>
